<compile_context>
chip_gen: v6e
topology: v6e:2x2x1
jax: 0.10.0
libtpu: 0.0.40
codegen_flags: <defaults>
</compile_context>

<pallas_src>
import jax
import jax.numpy as jnp
from jax import lax
from jax.experimental import pallas as pl
from jax.experimental.pallas import tpu as pltpu

IN_CH = 4
OUT_CH = 16
NUM_SCALE = 4
INTER = OUT_CH // NUM_SCALE          # inter_capacity = 4
B, H, W = 2, 16, 16

# pltpu.roll follows jnp.roll semantics: roll(x, a, axis)[..., i] = x[..., (i-a) % n].
# To read v[:, p + d] we rotate by (-d) % n, i.e. sign = -1.  Pinned statically;
# verified off the forward path by the self-test in __main__.
_ROLL_SIGN = -1


# ------------------------------ fused kernel --------------------------------

def _make_fused_kernel(h, w, hw, bb, inter, num_scale, roll_sign):
    """Kernel body for one grid block of `bb` images laid out along lanes."""
    L = bb * hw
    cat_c = num_scale * inter

    def kernel(x_ref, w_init_ref, wf_ref, w_eca_ref, o_ref):
        # ---- hoisted spatial iotas + 3x3 boundary masks (reused by every scale) ----
        p = lax.broadcasted_iota(jnp.int32, (inter, L), 1)
        sp = p % hw                        # position inside its own image
        row = sp // w
        col = sp % w
        valids = {}
        for k in range(9):
            if k == 4:                     # center tap needs no mask
                continue
            oh, ow = k // 3 - 1, k % 3 - 1
            valids[k] = ((row + oh >= 0) & (row + oh < h) &
                         (col + ow >= 0) & (col + ow < w))

        def stack_taps(v):
            # v: (inter, L) f32 -> (9*inter, L) bf16 stacked RHS, row index k*inter + c.
            pieces = []
            for k in range(9):
                oh, ow = k // 3 - 1, k % 3 - 1
                d = oh * w + ow
                s = v if d == 0 else pltpu.roll(v, (roll_sign * d) % L, axis=1)
                if k != 4:
                    s = jnp.where(valids[k], s, 0.0)
                pieces.append(s)
            return jnp.concatenate(pieces, axis=0).astype(jnp.bfloat16)

        # ---- init 1x1 conv: (inter, cin) @ (cin, L) on the MXU ----
        out = jnp.dot(w_init_ref[...], x_ref[0].astype(jnp.bfloat16),
                      preferred_element_type=jnp.float32)              # (inter, L) f32

        # ---- scales: fused depthwise3x3 + pointwise1x1 == ONE K=9*inter matmul ----
        outs = [out]
        for i in range(num_scale - 1):
            out = jnp.dot(wf_ref[i], stack_taps(out),
                          preferred_element_type=jnp.float32)
            outs.insert(0, out)            # newest scale first (torch.cat order)
        cat = jnp.concatenate(outs, axis=0)                            # (cat_c, L)

        # ---- ECA: per-image channel mean -> k=3 banded conv -> sigmoid -> rescale ----
        ci = lax.broadcasted_iota(jnp.int32, (cat_c, cat_c), 0)
        cj = lax.broadcasted_iota(jnp.int32, (cat_c, cat_c), 1)
        dd = cj - ci
        band = (jnp.where(dd == -1, w_eca_ref[0], 0.0)
                + jnp.where(dd == 0, w_eca_ref[1], 0.0)
                + jnp.where(dd == 1, w_eca_ref[2], 0.0))               # (cat_c, cat_c)

        if bb == 1:
            m = jnp.sum(cat, axis=1, keepdims=True) * (1.0 / hw)       # (cat_c, 1)
            gate = jax.nn.sigmoid(
                jnp.dot(band, m, preferred_element_type=jnp.float32))
            o_ref[0] = cat * gate
        else:
            img = lax.broadcasted_iota(jnp.int32, (cat_c, L), 1) // hw
            gate_full = jnp.zeros((cat_c, L), jnp.float32)
            for b in range(bb):            # bb is tiny (<= batch); per-image gating
                msk = img == b
                m = jnp.sum(jnp.where(msk, cat, 0.0), axis=1,
                            keepdims=True) * (1.0 / hw)
                g = jax.nn.sigmoid(
                    jnp.dot(band, m, preferred_element_type=jnp.float32))
                gate_full = jnp.where(msk, g, gate_full)
            o_ref[0] = cat * gate_full     # lane-dense unmasked store

    return kernel


# -------------------------------- wrapper ------------------------------------

def _forward_impl(x_nchw, params, n_blocks):
    b, cin, h, w = x_nchw.shape
    hw = h * w
    bb = b // n_blocks
    L = bb * hw
    inter = params["w_init"].shape[0]
    num_scale = len(params["w_dw"]) + 1
    cat_c = num_scale * inter

    # (B, C, H, W) -> (n_blocks, C, bb*HW): each block's images folded into lanes.
    x3 = (x_nchw.astype(jnp.float32)
          .reshape(n_blocks, bb, cin, hw)
          .transpose(0, 2, 1, 3)
          .reshape(n_blocks, cin, L))

    w_init2 = params["w_init"][:, :, 0, 0].astype(jnp.bfloat16)        # (inter, cin)

    # Fused per-scale weights, lane-dense layout:
    #   wf[i, o, k*inter + c] = w_pw[i][o, c] * w_dw[i][c, kh, kw],  k = kh*3 + kw
    wf_parts = []
    for i in range(num_scale - 1):
        wdw9 = params["w_dw"][i][:, 0].reshape(inter, 9)               # (c, k)
        wpw = params["w_pw"][i][:, :, 0, 0]                            # (o, c)
        wf_parts.append((wpw[:, None, :] * jnp.transpose(wdw9)[None, :, :])
                        .reshape(inter, 9 * inter))
    wf = jnp.stack(wf_parts, axis=0).astype(jnp.bfloat16)              # (ns-1, inter, 9*inter)
    w_eca = params["w_eca"].reshape(3).astype(jnp.float32)             # 3 SMEM scalars

    kernel = _make_fused_kernel(h, w, hw, bb, inter, num_scale, _ROLL_SIGN)
    out = pl.pallas_call(
        kernel,
        out_shape=jax.ShapeDtypeStruct((n_blocks, cat_c, L), jnp.float32),
        grid=(n_blocks,),
        in_specs=[
            pl.BlockSpec((1, cin, L), lambda i: (i, 0, 0)),
            pl.BlockSpec((inter, cin), lambda i: (0, 0)),
            pl.BlockSpec((num_scale - 1, inter, 9 * inter), lambda i: (0, 0, 0)),
            pl.BlockSpec(memory_space=pltpu.MemorySpace.SMEM),
        ],
        out_specs=pl.BlockSpec((1, cat_c, L), lambda i: (i, 0, 0)),
        compiler_params=pltpu.CompilerParams(
            dimension_semantics=("parallel",)),
    )(x3, w_init2, wf, w_eca)

    # (n_blocks, cat_c, bb*HW) -> (B, cat_c, H, W)
    return (out.reshape(n_blocks, cat_c, bb, hw)
            .transpose(0, 2, 1, 3)
            .reshape(b, cat_c, h, w))


_forward_jit = jax.jit(_forward_impl, static_argnums=(2,))


def _grid_blocks_for_batch(batch):
    """Multi-TensorCore chips (v4/v5p/v7x): batch-parallel grid (one image per
    core).  Single-TC chips (v5e/v6e): fold the whole batch into lanes.  Both
    layouts are numerically identical; this only affects performance."""
    try:
        kind = jax.devices()[0].device_kind.lower()
    except Exception:
        kind = ""
    multi_tc = any(tag in kind for tag in ("v7", "v4", "v5p"))
    if multi_tc and batch % 2 == 0:
        return 2
    return 1


def our_conv2d_forward(x_nchw, params):
    """Matches Our_Conv2d.forward; input/output are NCHW like PyTorch."""
    return _forward_jit(x_nchw, params, _grid_blocks_for_batch(x_nchw.shape[0]))


# --------------------------- pure-JAX reference ------------------------------

def reference_forward(x, params):
    dn = ("NCHW", "OIHW", "NCHW")
    prec = lax.Precision.HIGHEST
    ic = params["w_init"].shape[0]
    out = lax.conv_general_dilated(x, params["w_init"], (1, 1), "VALID",
                                   dimension_numbers=dn, precision=prec)
    cat = out
    for i in range(NUM_SCALE - 1):
        dwo = lax.conv_general_dilated(out, params["w_dw"][i], (1, 1),
                                       ((1, 1), (1, 1)), dimension_numbers=dn,
                                       feature_group_count=ic, precision=prec)
        out = lax.conv_general_dilated(dwo, params["w_pw"][i], (1, 1), "VALID",
                                       dimension_numbers=dn, precision=prec)
        cat = jnp.concatenate([out, cat], axis=1)
    y = jnp.mean(cat, axis=(2, 3))                                     # (B, C)
    w3 = params["w_eca"].reshape(3)
    ypad = jnp.pad(y, ((0, 0), (1, 1)))
    z = w3[0] * ypad[:, :-2] + w3[1] * ypad[:, 1:-1] + w3[2] * ypad[:, 2:]
    s = jax.nn.sigmoid(z)[:, :, None, None]
    return cat * s


# ------------------- test-only roll-convention verification ------------------

def _roll_convention_sign():
    """Unit-test helper (NOT on the forward path): returns s such that
    pltpu.roll(v, (s*d) % n, axis=-1)[..., p] == v[..., p + d]."""
    def _k(x_ref, o_ref):
        o_ref[...] = pltpu.roll(x_ref[...], 1, axis=1)

    xcal = jnp.tile(jnp.arange(128, dtype=jnp.float32)[None, :], (8, 1))
    ycal = pl.pallas_call(
        _k, out_shape=jax.ShapeDtypeStruct((8, 128), jnp.float32))(xcal)
    # jnp.roll convention puts x[..., -1] (= 127) at lane 0 for shift = +1.
    return -1 if float(ycal[0, 0]) == 127.0 else 1


# ---------------------------------- main -------------------------------------

if __name__ == "__main__":
    # Verify the statically pinned pltpu.roll convention (test-time only, per
    # the perf review).  Never expected to trigger; purely a safety net.
    _detected_sign = _roll_convention_sign()
    if _detected_sign != _ROLL_SIGN:
        _ROLL_SIGN = _detected_sign

    key = jax.random.PRNGKey(0)
    ks = jax.random.split(key, 9)

    params = {
        # nn.Conv2d(in_ch, inter, 1, bias=False) -> (inter, in_ch, 1, 1)
        "w_init": 0.2 * jax.random.normal(ks[0], (INTER, IN_CH, 1, 1), jnp.float32),
        # depthwise (inter, 1, 3, 3), pointwise (inter, inter, 1, 1) x (num_scale-1)
        "w_dw": [0.2 * jax.random.normal(ks[1 + 2 * i], (INTER, 1, 3, 3), jnp.float32)
                 for i in range(NUM_SCALE - 1)],
        "w_pw": [0.2 * jax.random.normal(ks[2 + 2 * i], (INTER, INTER, 1, 1), jnp.float32)
                 for i in range(NUM_SCALE - 1)],
        # nn.Conv1d(1, 1, 3, padding=1, bias=False) -> (1, 1, 3)
        "w_eca": 0.5 * jax.random.normal(ks[7], (1, 1, 3), jnp.float32),
    }

    x = jax.random.normal(ks[8], (B, IN_CH, H, W), jnp.float32)        # NCHW like PyTorch

    out = jax.block_until_ready(our_conv2d_forward(x, params))
    ref = jax.block_until_ready(reference_forward(x, params))

    assert out.shape == (B, NUM_SCALE * INTER, H, W), out.shape
    max_err = float(jnp.max(jnp.abs(out - ref)))
    # bf16 MXU operands vs. the reference's Precision.HIGHEST f32 convs.
    assert max_err < 2e-2, f"max abs error {max_err}"
    print("KERNEL_OK")
</pallas_src>

<mosaic_0001>
module attributes {stable_mosaic.version = 11 : i64} {
  func.func @_k(%arg0: memref<8x128xf32, #tpu.memory_space<vmem>>, %arg1: memref<8x128xf32, #tpu.memory_space<vmem>>) attributes {dimension_semantics = [], scalar_prefetch = 0 : i64, scratch_operands = 0 : i64, tpu.core_type = #tpu.core_type<tc>} {
    %c0 = arith.constant 0 : index
    %c0_0 = arith.constant 0 : index
    %0 = vector.load %arg0[%c0, %c0_0] : memref<8x128xf32, #tpu.memory_space<vmem>>, vector<8x128xf32>
    %c1_i32 = arith.constant 1 : i32
    %1 = tpu.dynamic_rotate %0 by %c1_i32 dim 1 : vector<8x128xf32>, i32 -> vector<8x128xf32>
    %c0_1 = arith.constant 0 : index
    %c0_2 = arith.constant 0 : index
    %2 = vector.load %arg1[%c0_1, %c0_2] : memref<8x128xf32, #tpu.memory_space<vmem>>, vector<8x128xf32>
    tpu.vector_store %arg1[%c0_1, %c0_2], %1 {strides = array<i32>} : memref<8x128xf32, #tpu.memory_space<vmem>>, vector<8x128xf32>,
    return
  }
}

</mosaic_0001>

<llo_original>
// kernel: tpu_custom_call.1
$region0: #{tpu_custom_call.1}
  #allocation0 [shape = 'u32[]', space=smem, size = 0x4, offset = 0x4, fixed_abs, tag = 'smem constant byte address 0x4 - core index']
  #allocation1 [shape = 'u32[144,128]{1,0:T(1,128)}', space=vmem, size = 0x12000, scoped, tag = 'internal scratch']
  %s0 = inlined_call_operand.hbm [shape: f32[8,128], index: 0, kind: input, shape index: {}]
  %s1 = inlined_call_operand.hbm [shape: f32[8,128], index: 1, kind: output, shape index: {}]
  %s2 = sld [smem:[#allocation0]]
  $region18: #{tpu_custom_call.1} parent=0
    _
  %s4 = ssub.s32 1, %s2
  %s5 = scalar_select 0, %s4, %s2
  $region1: #{tpu_custom_call.1} parent=0
    #allocation2 [shape = 'u8[4096]{0}', space=vmem, size = 0x1000, scoped, tag = 'input window, operand 0, single buffered']
    #allocation3 [shape = 's32[1]{0}', space=sflag, size = 0x4, scoped, tag = 'scoped memory for tpu_custom_call.1']
    #allocation4 [shape = 's32[1]{0}', space=sflag, size = 0x4, scoped, tag = 'scoped memory for tpu_custom_call.1']
    #allocation5 [shape = 'u8[4096]{0}', space=vmem, size = 0x1000, scoped, tag = 'output window, operand 0, single buffered']
    %6 = vsyncpa [#allocation3], 0
    %7 = vsyncpa [#allocation4], 0
    // Predicated region
    $region2: #{tpu_custom_call.1} parent=1 // pred_check
      _
    $region3: #{tpu_custom_call.1} parent=1 // pred_check_branch
      %9 = sbr.rel (0) target = $region5
    $region4: #{tpu_custom_call.1} parent=1 // pred_region
      %s11 = ssub.s32 128, 128
      %12 = vsyncadd [#allocation3], %s11
      %s14 = sshll.u32 [#allocation2], 4
      %s15 = int_to_ptr.vmem [resolvable:$true] %s14
      %17 = dma.hbm_to_vmem [thread:$0]  %s0, 128, %s15, [#allocation3]
    $region5: #{tpu_custom_call.1} parent=1 // pred_fallthru
      _
    // Predicated region
    $region6: #{tpu_custom_call.1} parent=1 // pred_check
      _
    $region7: #{tpu_custom_call.1} parent=1 // pred_check_branch
      %19 = sbr.rel (0) target = $region9
    $region8: #{tpu_custom_call.1} parent=1 // pred_region
      %20 = dma.done [#allocation3], 128
    $region9: #{tpu_custom_call.1} parent=1 // pred_fallthru
      _
    %v21 = vld [vmem:[#allocation2] sm:$0xff]
    %22 = vrot.lane.b32.xlu0 %v21, 1
    %v23 = vpop.permute.xlu0 %22
    %24 = vst [vmem:[#allocation5] sm:$0xff] %v23
    // Predicated region
    $region10: #{tpu_custom_call.1} parent=1 // pred_check
      _
    $region11: #{tpu_custom_call.1} parent=1 // pred_check_branch
      %26 = sbr.rel (0) target = $region13
    $region12: #{tpu_custom_call.1} parent=1 // pred_region
      %s28 = ssub.s32 128, 128
      %29 = vsyncadd [#allocation4], %s28
      %s31 = sshll.u32 [#allocation5], 4
      %s32 = int_to_ptr.vmem [resolvable:$true] %s31
      %34 = dma.vmem_to_hbm [thread:$0]  %s32, 128, %s1, [#allocation4]
    $region13: #{tpu_custom_call.1} parent=1 // pred_fallthru
      _
    // Predicated region
    $region14: #{tpu_custom_call.1} parent=1 // pred_check
      _
    $region15: #{tpu_custom_call.1} parent=1 // pred_check_branch
      %36 = sbr.rel (0) target = $region17
    $region16: #{tpu_custom_call.1} parent=1 // pred_region
      %37 = dma.done [#allocation4], 128
    $region17: #{tpu_custom_call.1} parent=1 // pred_fallthru
      _
    %38 = vsyncpa [#allocation3], 1
    %39 = vsyncpa [#allocation4], 1

</llo_original>
